<compile_context>
chip_gen: v7x
topology: tpu7x:2x2x1
jax: 0.10.0
libtpu: 0.0.40
codegen_flags: <defaults>
</compile_context>

<pallas_src>
import functools
import math

import jax
import jax.numpy as jnp
from jax import lax
from jax.experimental import pallas as pl
from jax.experimental.pallas import tpu as pltpu


# ---------------------------------------------------------------------------
# pltpu.roll direction probe.  The conv kernel needs "the shift that yields the
# left neighbour (slab[m-1])"; run a tiny kernel once (eagerly, before the
# forward pass is jitted) so a convention difference cannot silently flip the
# 3x3 stencil.
# ---------------------------------------------------------------------------
_ROLL_PREV_SHIFT = 1  # default: jnp.roll convention (out[m] = in[m - shift])


def _roll_probe_kernel(x_ref, o_ref):
    o_ref[...] = pltpu.roll(x_ref[...], shift=1, axis=1)


def _detect_roll_convention():
    global _ROLL_PREV_SHIFT
    x = jnp.broadcast_to(jnp.arange(128, dtype=jnp.float32), (8, 128))
    y = pl.pallas_call(
        _roll_probe_kernel,
        out_shape=jax.ShapeDtypeStruct((8, 128), jnp.float32),
    )(x)
    # jnp.roll convention: out[:, 1] == in[:, 0] == 0.0 (otherwise it is 2.0).
    _ROLL_PREV_SHIFT = 1 if float(jax.device_get(y)[0, 1]) < 0.5 else -1


# ---------------------------------------------------------------------------
# Fused 3x3 / stride-1 / pad-1 conv + bias + ReLU, channel-major.
# ---------------------------------------------------------------------------
def _dx_tap(slab, dx, masks, prev, nxt):
    """Return the dx-shifted (and W-edge-masked) version of a (Cin, tm) slab."""
    if dx == 0:      # tap reads column w-1; invalid (padding) where w == 0
        return pltpu.roll(slab, shift=prev, axis=1) * masks[0:1, :]
    if dx == 2:      # tap reads column w+1; invalid (padding) where w == W-1
        return pltpu.roll(slab, shift=nxt, axis=1) * masks[1:2, :]
    return slab


def _conv3x3_relu_outer_kernel(x3_ref, w_ref, m_ref, b_ref, o_ref, *, prev_shift):
    # Cin == 1 path: 9 VPU outer-product accumulations (K == 1, MXU pointless).
    # x3_ref: (3, 1, tm)   dy-shifted input slabs (columns = flattened b,h,w)
    # w_ref : (9, Cout, 1) per-tap weights, tap index = dy*3 + dx
    # m_ref : (2, tm)      edge masks: row0 zeroes w==0, row1 zeroes w==W-1
    # b_ref : (Cout, 1)    bias
    # o_ref : (Cout, tm)   lane-dense output block
    tm = x3_ref.shape[2]
    prev = prev_shift % tm          # roll amount giving slab[m-1]
    nxt = (tm - prev) % tm          # roll amount giving slab[m+1]
    masks = m_ref[...]
    acc = jnp.zeros(o_ref.shape, jnp.float32)
    for dy in range(3):
        slab = x3_ref[dy]           # (1, tm)
        for dx in range(3):
            xs = _dx_tap(slab, dx, masks, prev, nxt)
            acc = acc + w_ref[dy * 3 + dx] * xs   # (Cout,1)*(1,tm) on the VPU
    o_ref[...] = jnp.maximum(acc + b_ref[...], 0.0)


def _conv3x3_relu_stacked_kernel(x3_ref, w_ref, m_ref, b_ref, o_ref, xs_ref,
                                 *, prev_shift):
    # Cin multiple of 8: build the (9*Cin, tm) tap stack in a VMEM scratch with
    # sublane-aligned stores, then one MXU dot with K = 9*Cin (much better MXU
    # utilisation than nine K=Cin dots).
    # x3_ref: (3, Cin, tm);  w_ref: (Cout, 9*Cin);  xs_ref scratch: (9*Cin, tm)
    cin = x3_ref.shape[1]
    tm = x3_ref.shape[2]
    prev = prev_shift % tm
    nxt = (tm - prev) % tm
    masks = m_ref[...]
    for dy in range(3):
        slab = x3_ref[dy]           # (Cin, tm)
        for dx in range(3):
            t = dy * 3 + dx
            xs_ref[pl.ds(t * cin, cin), :] = _dx_tap(slab, dx, masks, prev, nxt)
    acc = jnp.dot(w_ref[...], xs_ref[...], preferred_element_type=jnp.float32)
    o_ref[...] = jnp.maximum(acc + b_ref[...], 0.0)


def _pick_block_cols(n_rows, W, target_cols):
    """Largest multiple of W that divides n_rows*W and is <= ~target_cols."""
    rows_per_tile = max(1, target_cols // W)
    rows_per_tile = math.gcd(n_rows, rows_per_tile)
    return rows_per_tile * W


def conv3x3_relu_cm(x_cm, w, b, *, B, H, W, target_cols):
    """x_cm: (Cin, B*H*W) channel-major; returns (Cout, B*H*W)."""
    Cin = x_cm.shape[0]
    Cout = w.shape[0]
    M = B * H * W
    assert x_cm.shape == (Cin, M)
    tm = _pick_block_cols(B * H, W, target_cols)
    assert tm % W == 0 and M % tm == 0

    # dy-shifted slabs (zero-padded in H), built once in XLA glue.
    x4 = x_cm.reshape(Cin, B, H, W)
    xpH = jnp.pad(x4, ((0, 0), (0, 0), (1, 1), (0, 0)))
    x3 = jnp.stack([xpH[:, :, dy:dy + H, :] for dy in range(3)], axis=0)
    x3 = x3.reshape(3, Cin, M)

    # Bias column and W-boundary masks (tm % W == 0 -> identical per tile).
    b_col = b.reshape(Cout, 1).astype(jnp.float32)
    wpos = jnp.arange(tm, dtype=jnp.int32) % W
    mask = jnp.stack([(wpos != 0), (wpos != W - 1)], axis=0).astype(jnp.float32)

    stacked = (Cin % 8 == 0)
    if stacked:
        # w_stk[cout, (dy*3+dx)*Cin + cin] = w[cout, cin, dy, dx]
        w_in = jnp.transpose(w, (0, 2, 3, 1)).reshape(Cout, 9 * Cin)
        w_in = w_in.astype(jnp.float32)
        w_spec = pl.BlockSpec((Cout, 9 * Cin), lambda i: (0, 0))
        kernel = functools.partial(_conv3x3_relu_stacked_kernel,
                                   prev_shift=_ROLL_PREV_SHIFT)
        scratch = [pltpu.VMEM((9 * Cin, tm), jnp.float32)]
    else:
        # Per-tap weights (tap = dy*3 + dx).
        w_in = jnp.transpose(w, (2, 3, 0, 1)).reshape(9, Cout, Cin)
        w_in = w_in.astype(jnp.float32)
        w_spec = pl.BlockSpec((9, Cout, Cin), lambda i: (0, 0, 0))
        kernel = functools.partial(_conv3x3_relu_outer_kernel,
                                   prev_shift=_ROLL_PREV_SHIFT)
        scratch = []

    return pl.pallas_call(
        kernel,
        out_shape=jax.ShapeDtypeStruct((Cout, M), jnp.float32),
        grid_spec=pltpu.PrefetchScalarGridSpec(
            num_scalar_prefetch=0,
            grid=(M // tm,),
            in_specs=[
                pl.BlockSpec((3, Cin, tm), lambda i: (0, 0, i)),
                w_spec,
                pl.BlockSpec((2, tm), lambda i: (0, 0)),
                pl.BlockSpec((Cout, 1), lambda i: (0, 0)),
            ],
            out_specs=pl.BlockSpec((Cout, tm), lambda i: (0, i)),
            scratch_shapes=scratch,
        ),
        compiler_params=pltpu.CompilerParams(
            dimension_semantics=("parallel",)),
    )(x3, w_in, mask, b_col)


# ---------------------------------------------------------------------------
# 2x2 / stride-2 max pool, channel-major.  Row pairs are adjacent W-wide lane
# groups in the flattened layout, so the H-pool is a VPU max of two aligned
# slices; column compaction uses two small selector matmuls.
# ---------------------------------------------------------------------------
def _maxpool2x2_kernel(x_ref, se_ref, so_ref, o_ref):
    # x_ref: (R, 2*W) -- each row holds both H-rows of one pool row pair.
    W = x_ref.shape[1] // 2
    rows = jnp.maximum(x_ref[:, pl.ds(0, W)], x_ref[:, pl.ds(W, W)])   # (R, W)
    even = jnp.dot(rows, se_ref[...], preferred_element_type=jnp.float32)
    odd = jnp.dot(rows, so_ref[...], preferred_element_type=jnp.float32)
    o_ref[...] = jnp.maximum(even, odd)


def maxpool2x2_cm(x_cm, *, B, H, W):
    """x_cm: (C, B*H*W); returns (C, B*(H//2)*(W//2))."""
    C = x_cm.shape[0]
    H2, W2 = H // 2, W // 2
    R = B * H2
    x3d = x_cm.reshape(C, R, 2 * W)
    se = jax.nn.one_hot(2 * jnp.arange(W2), W, dtype=jnp.float32).T       # (W, W2)
    so = jax.nn.one_hot(2 * jnp.arange(W2) + 1, W, dtype=jnp.float32).T   # (W, W2)
    out = pl.pallas_call(
        _maxpool2x2_kernel,
        out_shape=jax.ShapeDtypeStruct((C, R, W2), jnp.float32),
        grid_spec=pltpu.PrefetchScalarGridSpec(
            num_scalar_prefetch=0,
            grid=(C,),
            in_specs=[
                pl.BlockSpec((None, R, 2 * W), lambda c: (c, 0, 0)),
                pl.BlockSpec((W, W2), lambda c: (0, 0)),
                pl.BlockSpec((W, W2), lambda c: (0, 0)),
            ],
            out_specs=pl.BlockSpec((None, R, W2), lambda c: (c, 0, 0)),
        ),
        compiler_params=pltpu.CompilerParams(
            dimension_semantics=("parallel",)),
    )(x3d, se, so)
    return out.reshape(C, R * W2)


# ---------------------------------------------------------------------------
# Fused fc1 (+bias+ReLU) and fc2 (+bias): K-tiled GEMM with a VMEM accumulator,
# fc2 folded into the last-k epilogue.
# ---------------------------------------------------------------------------
def _fc_fused_kernel(x_ref, w1_ref, b1_ref, w2_ref, b2_ref, o_ref, acc_ref):
    k = pl.program_id(0)

    @pl.when(k == 0)
    def _():
        acc_ref[...] = jnp.zeros_like(acc_ref)

    acc_ref[...] += jnp.dot(x_ref[...], w1_ref[...],
                            preferred_element_type=jnp.float32)

    @pl.when(k == pl.num_programs(0) - 1)
    def _():
        h = jnp.maximum(acc_ref[...] + b1_ref[...], 0.0)          # (B, 128)
        o_ref[...] = (jnp.dot(h, w2_ref[...],
                              preferred_element_type=jnp.float32)
                      + b2_ref[...]).astype(o_ref.dtype)


def fc_relu_fc(x, w1, b1, w2, b2, *, target_tk=8192):
    B, K = x.shape
    K2, N1 = w1.shape
    N1b, N2 = w2.shape
    assert K == K2 and N1 == N1b
    tk = math.gcd(K, target_tk)
    b1r = b1.reshape(1, N1).astype(jnp.float32)
    b2r = b2.reshape(1, N2).astype(jnp.float32)
    return pl.pallas_call(
        _fc_fused_kernel,
        out_shape=jax.ShapeDtypeStruct((B, N2), jnp.float32),
        grid_spec=pltpu.PrefetchScalarGridSpec(
            num_scalar_prefetch=0,
            grid=(K // tk,),
            in_specs=[
                pl.BlockSpec((B, tk), lambda k: (0, k)),
                pl.BlockSpec((tk, N1), lambda k: (k, 0)),
                pl.BlockSpec((1, N1), lambda k: (0, 0)),
                pl.BlockSpec((N1, N2), lambda k: (0, 0)),
                pl.BlockSpec((1, N2), lambda k: (0, 0)),
            ],
            out_specs=pl.BlockSpec((B, N2), lambda k: (0, 0)),
            scratch_shapes=[pltpu.VMEM((B, N1), jnp.float32)],
        ),
        compiler_params=pltpu.CompilerParams(
            dimension_semantics=("arbitrary",)),
    )(x, w1, b1r, w2, b2r)


# ---------------------------------------------------------------------------
# SimpleCNN forward (Pallas) and pure-JAX reference.
# ---------------------------------------------------------------------------
def simple_cnn_forward(x, params):
    B, Cin, H, W = x.shape
    # To channel-major (C, B*H*W); for Cin == 1 this is just a reshape.
    x_cm = jnp.transpose(x, (1, 0, 2, 3)).reshape(Cin, B * H * W)

    y = conv3x3_relu_cm(x_cm, params["w1"], params["b1"],
                        B=B, H=H, W=W, target_cols=16384)       # (16, B*H*W)
    y = maxpool2x2_cm(y, B=B, H=H, W=W)                          # (16, B*H*W/4)

    H2, W2 = H // 2, W // 2
    y = conv3x3_relu_cm(y, params["w2"], params["b2"],
                        B=B, H=H2, W=W2, target_cols=8192)       # (32, B*H2*W2)
    y = maxpool2x2_cm(y, B=B, H=H2, W=W2)                        # (32, B*H2*W2/4)

    # Flatten to torch's x.view(-1, 32*64*64) order: (B, C*H4*W4), C-major.
    H4, W4 = H2 // 2, W2 // 2
    C2 = params["w2"].shape[0]
    feat = y.reshape(C2, B, H4 * W4).transpose(1, 0, 2).reshape(B, C2 * H4 * W4)

    return fc_relu_fc(feat, params["wfc1"], params["bfc1"],
                      params["wfc2"], params["bfc2"], target_tk=8192)


def reference_forward(x, params):
    dn = ('NCHW', 'OIHW', 'NCHW')
    hi = lax.Precision.HIGHEST
    y = lax.conv_general_dilated(x, params["w1"], (1, 1), 'SAME',
                                 dimension_numbers=dn, precision=hi)
    y = jax.nn.relu(y + params["b1"][None, :, None, None])
    y = lax.reduce_window(y, -jnp.inf, lax.max, (1, 1, 2, 2), (1, 1, 2, 2), 'VALID')
    y = lax.conv_general_dilated(y, params["w2"], (1, 1), 'SAME',
                                 dimension_numbers=dn, precision=hi)
    y = jax.nn.relu(y + params["b2"][None, :, None, None])
    y = lax.reduce_window(y, -jnp.inf, lax.max, (1, 1, 2, 2), (1, 1, 2, 2), 'VALID')
    y = y.reshape(x.shape[0], -1)
    y = jax.nn.relu(jnp.dot(y, params["wfc1"], precision=hi) + params["bfc1"])
    return jnp.dot(y, params["wfc2"], precision=hi) + params["bfc2"]


def init_params(key, num_classes=2):
    ks = jax.random.split(key, 8)
    p = {}
    p["w1"] = jax.random.normal(ks[0], (16, 1, 3, 3), jnp.float32) * (1.0 / 3.0)
    p["b1"] = jax.random.normal(ks[1], (16,), jnp.float32) * 0.1
    p["w2"] = jax.random.normal(ks[2], (32, 16, 3, 3), jnp.float32) * (1.0 / 12.0)
    p["b2"] = jax.random.normal(ks[3], (32,), jnp.float32) * 0.1
    # Linear weights stored transposed vs torch: (in_features, out_features).
    p["wfc1"] = jax.random.normal(ks[4], (32 * 64 * 64, 128), jnp.float32) * (1.0 / 362.0)
    p["bfc1"] = jax.random.normal(ks[5], (128,), jnp.float32) * 0.1
    p["wfc2"] = jax.random.normal(ks[6], (128, num_classes), jnp.float32) * (1.0 / 11.3)
    p["bfc2"] = jax.random.normal(ks[7], (num_classes,), jnp.float32) * 0.1
    return p


if __name__ == "__main__":
    _detect_roll_convention()   # must run eagerly before tracing the forward

    key = jax.random.PRNGKey(0)
    pkey, xkey = jax.random.split(key)
    num_classes = 2
    params = init_params(pkey, num_classes=num_classes)

    # The module's fc1 (32*64*64 inputs) pins the input to 1x256x256; batch = 2.
    x = jax.random.normal(xkey, (2, 1, 256, 256), jnp.float32)

    fwd = jax.jit(simple_cnn_forward)
    out = jax.block_until_ready(fwd(x, params))
    assert out.shape == (2, num_classes)
    assert bool(jnp.all(jnp.isfinite(out)))

    ref = jax.block_until_ready(reference_forward(x, params))
    assert bool(jnp.allclose(out, ref, rtol=5e-2, atol=5e-2)), (
        "mismatch vs reference, max abs diff = "
        f"{float(jnp.max(jnp.abs(out - ref)))}")

    print("KERNEL_OK")
</pallas_src>

<mosaic_0001>
module attributes {stable_mosaic.version = 11 : i64} {
  func.func @_roll_probe_kernel(%arg0: memref<8x128xf32, #tpu.memory_space<vmem>>, %arg1: memref<8x128xf32, #tpu.memory_space<vmem>>) attributes {dimension_semantics = [], scalar_prefetch = 0 : i64, scratch_operands = 0 : i64, tpu.core_type = #tpu.core_type<tc>} {
    %c0 = arith.constant 0 : index
    %c0_0 = arith.constant 0 : index
    %0 = vector.load %arg0[%c0, %c0_0] : memref<8x128xf32, #tpu.memory_space<vmem>>, vector<8x128xf32>
    %c1_i32 = arith.constant 1 : i32
    %1 = tpu.dynamic_rotate %0 by %c1_i32 dim 1 : vector<8x128xf32>, i32 -> vector<8x128xf32>
    %c0_1 = arith.constant 0 : index
    %c0_2 = arith.constant 0 : index
    %2 = vector.load %arg1[%c0_1, %c0_2] : memref<8x128xf32, #tpu.memory_space<vmem>>, vector<8x128xf32>
    tpu.vector_store %arg1[%c0_1, %c0_2], %1 {strides = array<i32>} : memref<8x128xf32, #tpu.memory_space<vmem>>, vector<8x128xf32>,
    return
  }
}

</mosaic_0001>

<llo_original>
// kernel: tpu_custom_call.1
$region0: #{tpu_custom_call.1}
  #allocation0 [shape = 'u32[]', space=smem, size = 0x4, offset = 0x4, fixed_abs, tag = 'smem constant byte address 0x4 - core index']
  #allocation1 [shape = 'u32[144,128]{1,0:T(1,128)}', space=vmem, size = 0x12000, scoped, tag = 'internal scratch']
  %s0 = inlined_call_operand.hbm [shape: f32[8,128], index: 0, kind: input, shape index: {}]
  %s1 = inlined_call_operand.hbm [shape: f32[8,128], index: 1, kind: output, shape index: {}]
  %s2 = sld [smem:[#allocation0]]
  $region18: #{tpu_custom_call.1} parent=0
    _
  %s4 = ssub.s32 1, %s2
  %s5 = scalar_select 0, %s4, %s2
  $region1: #{tpu_custom_call.1} parent=0
    #allocation2 [shape = 'u8[4096]{0}', space=vmem, size = 0x1000, scoped, tag = 'input window, operand 0, single buffered']
    #allocation3 [shape = 's32[1]{0}', space=sflag, size = 0x4, scoped, tag = 'scoped memory for tpu_custom_call.1']
    #allocation4 [shape = 's32[1]{0}', space=sflag, size = 0x4, scoped, tag = 'scoped memory for tpu_custom_call.1']
    #allocation5 [shape = 'u8[4096]{0}', space=vmem, size = 0x1000, scoped, tag = 'output window, operand 0, single buffered']
    %6 = vsyncpa [#allocation3], 0
    %7 = vsyncpa [#allocation4], 0
    // Predicated region
    $region2: #{tpu_custom_call.1} parent=1 // pred_check
      _
    $region3: #{tpu_custom_call.1} parent=1 // pred_check_branch
      %9 = sbr.rel (0) target = $region5
    $region4: #{tpu_custom_call.1} parent=1 // pred_region
      %s11 = ssub.s32 128, 128
      %12 = vsyncadd [#allocation3], %s11
      %s14 = sshll.u32 [#allocation2], 4
      %s15 = int_to_ptr.vmem [resolvable:$true] %s14
      %17 = dma.hbm_to_vmem [thread:$0]  %s0, 128, %s15, [#allocation3]
    $region5: #{tpu_custom_call.1} parent=1 // pred_fallthru
      _
    // Predicated region
    $region6: #{tpu_custom_call.1} parent=1 // pred_check
      _
    $region7: #{tpu_custom_call.1} parent=1 // pred_check_branch
      %19 = sbr.rel (0) target = $region9
    $region8: #{tpu_custom_call.1} parent=1 // pred_region
      %20 = dma.done [#allocation3], 128
    $region9: #{tpu_custom_call.1} parent=1 // pred_fallthru
      _
    %v21 = vld [vmem:[#allocation2] sm:$0xff]
    %22 = vrot.lane.b32.xlu0 %v21, 1
    %v23 = vpop.permute.xlu0 %22
    %24 = vst [vmem:[#allocation5] sm:$0xff] %v23
    // Predicated region
    $region10: #{tpu_custom_call.1} parent=1 // pred_check
      _
    $region11: #{tpu_custom_call.1} parent=1 // pred_check_branch
      %26 = sbr.rel (0) target = $region13
    $region12: #{tpu_custom_call.1} parent=1 // pred_region
      %s28 = ssub.s32 128, 128
      %29 = vsyncadd [#allocation4], %s28
      %s31 = sshll.u32 [#allocation5], 4
      %s32 = int_to_ptr.vmem [resolvable:$true] %s31
      %34 = dma.vmem_to_hbm [thread:$0]  %s32, 128, %s1, [#allocation4]
    $region13: #{tpu_custom_call.1} parent=1 // pred_fallthru
      _
    // Predicated region
    $region14: #{tpu_custom_call.1} parent=1 // pred_check
      _
    $region15: #{tpu_custom_call.1} parent=1 // pred_check_branch
      %36 = sbr.rel (0) target = $region17
    $region16: #{tpu_custom_call.1} parent=1 // pred_region
      %37 = dma.done [#allocation4], 128
    $region17: #{tpu_custom_call.1} parent=1 // pred_fallthru
      _
    %38 = vsyncpa [#allocation3], 1
    %39 = vsyncpa [#allocation4], 1

</llo_original>
